<compile_context>
chip_gen: v7x
topology: tpu7x:2x2x1
jax: 0.10.0
libtpu: 0.0.40
codegen_flags: <defaults>
</compile_context>

<pallas_src>
from functools import partial

import jax
import jax.numpy as jnp
from jax import lax
from jax.experimental import pallas as pl
from jax.experimental.pallas import tpu as pltpu


def _contract_kernel(x_ref, o_ref, *, order):
    # x_ref / o_ref: (D, block_n) tiles, D = 3 (coords on sublanes, points on
    # lanes).  OOB lanes of a ragged last block hold unspecified data; any
    # NaN/inf produced there never lands because those writes are dropped.
    x = x_ref[...].astype(jnp.float32)

    if order is None or order == 2:
        # L2: predicate on mag^2, use rsqrt -> no sqrt, no divide.
        mag2 = jnp.sum(x * x, axis=0, keepdims=True)
        inv_mag = lax.rsqrt(mag2)
        keep = mag2 < 1.0
    elif order == float("inf"):
        # L_inf norm -> contracts to a cube of side length 4.
        mag = jnp.max(jnp.abs(x), axis=0, keepdims=True)
        inv_mag = pl.reciprocal(mag, approx=True)
        keep = mag < 1.0
    else:
        mag = jnp.sum(jnp.abs(x) ** order, axis=0, keepdims=True) ** (1.0 / order)
        inv_mag = pl.reciprocal(mag, approx=True)
        keep = mag < 1.0

    # Both branches are evaluated (like torch.where).  A point exactly at the
    # origin yields inf/NaN in the discarded branch; fine for the forward
    # pass, but would poison gradients if anyone differentiates through this.
    contracted = (2.0 - inv_mag) * (x * inv_mag)
    o_ref[...] = jnp.where(keep, x, contracted).astype(o_ref.dtype)


def _round_up(x, m):
    return ((x + m - 1) // m) * m


def scene_contraction_soa(x_soa, order=None, block_n=64 * 1024):
    """Contraction on SoA-layout positions of shape (3, N). Preferred entry."""
    d, n = x_soa.shape
    # Clamp the tile so tiny inputs don't allocate a mostly-empty VMEM buffer;
    # keep it a multiple of 128 lanes so the BlockSpec stays legal.
    block_n = max(128, min(block_n, _round_up(n, 128)))
    grid = (pl.cdiv(n, block_n),)

    return pl.pallas_call(
        partial(_contract_kernel, order=order),
        out_shape=jax.ShapeDtypeStruct((d, n), x_soa.dtype),
        grid=grid,
        in_specs=[pl.BlockSpec((d, block_n), lambda i: (0, i))],
        out_specs=pl.BlockSpec((d, block_n), lambda i: (0, i)),
        compiler_params=pltpu.CompilerParams(
            dimension_semantics=("parallel",),
            # 2 bufs * (in + out) * 8 sublane-padded rows * block_n * 4 B
            # = 8 MiB at block_n=64K; leave explicit headroom on every chip.
            vmem_limit_bytes=32 * 1024 * 1024,
        ),
    )(x_soa)


def scene_contraction(positions, order=None, block_n=64 * 1024):
    """PyTorch-compatible wrapper: positions [*bs, 3] -> contracted [*bs, 3]."""
    orig_shape = positions.shape
    d = orig_shape[-1]
    # One XLA transpose each way (AoS -> SoA -> AoS).  Prefer
    # scene_contraction_soa() if your pipeline can stay in (3, N) layout.
    x_soa = positions.reshape(-1, d).T            # (3, N)
    out_soa = scene_contraction_soa(x_soa, order=order, block_n=block_n)
    return out_soa.T.reshape(orig_shape)


def _reference(positions, order=None):
    """Pure-JAX reference mirroring the PyTorch module."""
    if order is None or order == 2:
        mag = jnp.linalg.norm(positions, axis=-1, keepdims=True)
    elif order == float("inf"):
        mag = jnp.max(jnp.abs(positions), axis=-1, keepdims=True)
    else:
        mag = jnp.sum(jnp.abs(positions) ** order, axis=-1, keepdims=True) ** (1.0 / order)
    return jnp.where(mag < 1, positions, (2 - 1 / mag) * (positions / mag))


if __name__ == "__main__":
    key = jax.random.PRNGKey(0)
    # *bs = (2, 4, 16), last dim = 3  ->  positions shape (2, 4, 16, 3)
    positions = 2.0 * jax.random.normal(key, (2, 4, 16, 3), dtype=jnp.float32)

    # Frobenius-norm contraction (default order=None); rsqrt-based path.
    out = scene_contraction(positions, order=None)
    out = jax.block_until_ready(out)
    ref = _reference(positions, order=None)
    assert out.shape == positions.shape and out.dtype == positions.dtype
    assert jnp.allclose(out, ref, atol=1e-5, rtol=1e-4)

    # L_inf contraction (recommended for hash encodings); uses EUP approx
    # reciprocal (~1e-3 relative), hence the looser tolerance.
    out_inf = scene_contraction(positions, order=float("inf"))
    out_inf = jax.block_until_ready(out_inf)
    ref_inf = _reference(positions, order=float("inf"))
    assert jnp.allclose(out_inf, ref_inf, atol=5e-3, rtol=5e-3)

    print("KERNEL_OK")
</pallas_src>

<mosaic_0001>
module attributes {stable_mosaic.version = 11 : i64} {
  func.func @_contract_kernel(%arg0: i32, %arg1: memref<3x128xf32, #tpu.memory_space<vmem>>, %arg2: memref<3x128xf32, #tpu.memory_space<vmem>>) attributes {dimension_semantics = [#tpu.dimension_semantics<parallel>], iteration_bounds = array<i64: 1>, scalar_prefetch = 0 : i64, scratch_operands = 0 : i64, tpu.core_type = #tpu.core_type<tc>, window_params = [{transform_indices = @transform_0, window_bounds = array<i64: 3, 128>}, {transform_indices = @transform_1, window_bounds = array<i64: 3, 128>}]} {
    %c0 = arith.constant 0 : index
    %c0_0 = arith.constant 0 : index
    %0 = vector.load %arg1[%c0, %c0_0] : memref<3x128xf32, #tpu.memory_space<vmem>>, vector<3x128xf32>
    %1 = arith.mulf %0, %0 : vector<3x128xf32>
    %cst = arith.constant dense<0.000000e+00> : vector<128xf32>
    %2 = vector.multi_reduction <add>, %1, %cst [0] : vector<3x128xf32> to vector<128xf32>
    %3 = vector.shape_cast %2 : vector<128xf32> to vector<1x128xf32>
    %4 = math.rsqrt %3 : vector<1x128xf32>
    %cst_1 = arith.constant 1.000000e+00 : f32
    %5 = vector.broadcast %cst_1 : f32 to vector<1x128xf32>
    %6 = arith.cmpf olt, %3, %5 : vector<1x128xf32>
    %cst_2 = arith.constant 2.000000e+00 : f32
    %7 = vector.broadcast %cst_2 : f32 to vector<1x128xf32>
    %8 = arith.subf %7, %4 : vector<1x128xf32>
    %9 = vector.broadcast %4 : vector<1x128xf32> to vector<3x128xf32>
    %10 = arith.mulf %0, %9 : vector<3x128xf32>
    %11 = vector.broadcast %8 : vector<1x128xf32> to vector<3x128xf32>
    %12 = arith.mulf %11, %10 : vector<3x128xf32>
    %13 = vector.shape_cast %6 : vector<1x128xi1> to vector<1x128xi1>
    %14 = vector.broadcast %13 : vector<1x128xi1> to vector<3x128xi1>
    %15 = arith.select %14, %0, %12 : vector<3x128xi1>, vector<3x128xf32>
    %c0_3 = arith.constant 0 : index
    %c0_4 = arith.constant 0 : index
    %16 = vector.load %arg2[%c0_3, %c0_4] : memref<3x128xf32, #tpu.memory_space<vmem>>, vector<3x128xf32>
    tpu.vector_store %arg2[%c0_3, %c0_4], %15 {strides = array<i32>} : memref<3x128xf32, #tpu.memory_space<vmem>>, vector<3x128xf32>,
    return
  }
  func.func @transform_0(%arg0: i32) -> (i32, i32) {
    %c0_i32 = arith.constant 0 : i32
    %c0_i32_0 = arith.constant 0 : i32
    return %c0_i32, %arg0 : i32, i32
  }
  func.func @transform_1(%arg0: i32) -> (i32, i32) {
    %c0_i32 = arith.constant 0 : i32
    %c0_i32_0 = arith.constant 0 : i32
    return %c0_i32, %arg0 : i32, i32
  }
}

</mosaic_0001>

<llo_original>
// kernel: tpu_custom_call.1
$region0: #{tpu_custom_call.1}
  #allocation0 [shape = 'u32[]', space=smem, size = 0x4, offset = 0x4, fixed_abs, tag = 'smem constant byte address 0x4 - core index']
  #allocation1 [shape = 'u32[144,128]{1,0:T(1,128)}', space=vmem, size = 0x12000, scoped, tag = 'internal scratch']
  %s0 = inlined_call_operand.hbm [shape: f32[3,128], index: 0, kind: input, shape index: {}]
  %s1 = inlined_call_operand.hbm [shape: f32[3,128], index: 1, kind: output, shape index: {}]
  %s2 = sld [smem:[#allocation0]]
  $region18: #{tpu_custom_call.1} parent=0
    _
  %s4 = ssub.s32 1, %s2
  %s5 = scalar_select 0, %s4, %s2
  $region1: #{tpu_custom_call.1} parent=0
    #allocation2 [shape = 'u8[2048]{0}', space=vmem, size = 0x800, scoped, tag = 'input window, operand 0, single buffered']
    #allocation3 [shape = 's32[1]{0}', space=sflag, size = 0x4, scoped, tag = 'scoped memory for tpu_custom_call.1']
    #allocation4 [shape = 's32[1]{0}', space=sflag, size = 0x4, scoped, tag = 'scoped memory for tpu_custom_call.1']
    #allocation5 [shape = 'u8[2048]{0}', space=vmem, size = 0x800, scoped, tag = 'output window, operand 0, single buffered']
    %6 = vsyncpa [#allocation3], 0
    %7 = vsyncpa [#allocation4], 0
    // Predicated region
    $region2: #{tpu_custom_call.1} parent=1 // pred_check
      _
    $region3: #{tpu_custom_call.1} parent=1 // pred_check_branch
      %9 = sbr.rel (0) target = $region5
    $region4: #{tpu_custom_call.1} parent=1 // pred_region
      %s11 = ssub.s32 64, 64
      %12 = vsyncadd [#allocation3], %s11
      %s14 = sshll.u32 [#allocation2], 4
      %s15 = int_to_ptr.vmem [resolvable:$true] %s14
      %17 = dma.hbm_to_vmem [thread:$0]  %s0, 64, %s15, [#allocation3]
    $region5: #{tpu_custom_call.1} parent=1 // pred_fallthru
      _
    // Predicated region
    $region6: #{tpu_custom_call.1} parent=1 // pred_check
      _
    $region7: #{tpu_custom_call.1} parent=1 // pred_check_branch
      %19 = sbr.rel (0) target = $region9
    $region8: #{tpu_custom_call.1} parent=1 // pred_region
      %20 = dma.done [#allocation3], 64
    $region9: #{tpu_custom_call.1} parent=1 // pred_fallthru
      _
    %v21 = vld [vmem:[#allocation2] sm:$0x7]
    %v22 = vmul.f32 %v21, %v21
    %vm23 = vcmask 1042432
    %v24 = vsel %vm23, %v22, 0.0
    %v25 = vrot.slane %v24, 4
    %v26 = vadd.f32 %v24, %v25
    %v27 = vrot.slane %v26, 2
    %v28 = vadd.f32 %v26, %v27
    %v29 = vrot.slane %v28, 1
    %v30 = vadd.f32 %v28, %v29
    %v31 = vrsqrt.pop %v30
    %vm32 = vcmp.lt.f32.partialorder %v30, 1.0
    %v33 = vsub.f32 2.0, %v31
    %v34 = vmul.f32 %v21, %v31
    %v35 = vmul.f32 %v33, %v34
    %v36 = vsel %vm32, 1, 0
    %vm37 = vcmp.eq.s32.totalorder %v36, 1
    %v38 = vsel %vm37, %v21, %v35
    %39 = vst [vmem:[#allocation5] sm:$0x7] %v38
    // Predicated region
    $region10: #{tpu_custom_call.1} parent=1 // pred_check
      _
    $region11: #{tpu_custom_call.1} parent=1 // pred_check_branch
      %41 = sbr.rel (0) target = $region13
    $region12: #{tpu_custom_call.1} parent=1 // pred_region
      %s43 = ssub.s32 64, 64
      %44 = vsyncadd [#allocation4], %s43
      %s46 = sshll.u32 [#allocation5], 4
      %s47 = int_to_ptr.vmem [resolvable:$true] %s46
      %49 = dma.vmem_to_hbm [thread:$0]  %s47, 64, %s1, [#allocation4]
    $region13: #{tpu_custom_call.1} parent=1 // pred_fallthru
      _
    // Predicated region
    $region14: #{tpu_custom_call.1} parent=1 // pred_check
      _
    $region15: #{tpu_custom_call.1} parent=1 // pred_check_branch
      %51 = sbr.rel (0) target = $region17
    $region16: #{tpu_custom_call.1} parent=1 // pred_region
      %52 = dma.done [#allocation4], 64
    $region17: #{tpu_custom_call.1} parent=1 // pred_fallthru
      _
    %53 = vsyncpa [#allocation3], 1
    %54 = vsyncpa [#allocation4], 1

</llo_original>
